<compile_context>
chip_gen: v5e
topology: v5e:2x2
jax: 0.10.0
libtpu: 0.0.40
codegen_flags: <defaults>
</compile_context>

<pallas_src>
import numpy as np

import jax
import jax.numpy as jnp
from jax.experimental import pallas as pl
from jax.experimental.pallas import tpu as pltpu


# ---------------------------------------------------------------------------
# Chip detection / budgets.
# ---------------------------------------------------------------------------

def _device_kind():
    try:
        return jax.devices()[0].device_kind.lower()
    except Exception:
        return ""


_KIND = _device_kind()
_IS_V7 = ("v7" in _KIND) or ("7x" in _KIND)     # 2 TensorCores / chip, 64 MiB VMEM
_NUM_TC = 2 if _IS_V7 else 1

# ~8 MiB per tile; in+out double-buffered => ~32 MiB, under the explicit limit below.
_TILE_TARGET_BYTES = 8 << 20
# v7x physical VMEM is 64 MiB -> stay well under it; v5e/v6e have 128 MiB physical.
_VMEM_LIMIT_BYTES = (48 << 20) if _IS_V7 else (64 << 20)

# Widest first: lane-dense output stores (unmasked vst) + fewer, longer DMA rows.
_LANE_CANDIDATES = (4096, 2048, 1024, 512, 256, 128)


# ---------------------------------------------------------------------------
# Tiling helpers.
# ---------------------------------------------------------------------------

def _choose_lanes(n, last_dim):
    for cand in _LANE_CANDIDATES:
        if n % cand == 0:
            return cand
    return last_dim                      # ragged fallback (correct, maybe masked)


def _row_tiling(rows, lanes, itemsize=4):
    """Pick (row_tile, grid).

    * 1-TC chips (v5e/v6e): one whole-array block whenever it fits the tile
      budget -> zero per-step pipeline overhead.
    * v7x: keep >= 2 grid steps so both TensorCores split the rows.
    * No exact-divisor requirement: Pallas masks the partial last block
      (elementwise / row-independent kernels -> still correct).
    """
    total = rows * lanes * itemsize
    if rows <= 8 or (_NUM_TC == 1 and total <= _TILE_TARGET_BYTES):
        return rows, 1
    tm = (_TILE_TARGET_BYTES // (lanes * itemsize)) // 8 * 8
    tm = max(8, min(tm, rows))
    if _NUM_TC > 1:
        cap = max(8, (rows // _NUM_TC) // 8 * 8)   # ensure >= _NUM_TC steps
        tm = min(tm, cap)
    # Prefer an exact divisor close to tm (avoids a masked remainder block).
    for t in range(tm, max(8, tm - 64) - 1, -8):
        if rows % t == 0:
            tm = t
            break
    grid = pl.cdiv(rows, tm)
    return tm, grid


def _grid_semantics(grid):
    if grid <= 1:
        return ("arbitrary",)
    if _IS_V7 and grid % _NUM_TC == 0:
        core_par = getattr(pltpu, "CORE_PARALLEL", None)
        if core_par is not None:
            return (core_par,)           # explicit 2-TC split on v7x
    return ("parallel",)


# ---------------------------------------------------------------------------
# Fast path: identity weight -> pure cast kernel (no MXU, no weight DMA).
# ---------------------------------------------------------------------------

def _cast_kernel(x_ref, o_ref):
    # Mirrors torch: x.to(bfloat16) followed by .float() (bf16 round trip).
    o_ref[...] = x_ref[...].astype(jnp.bfloat16).astype(jnp.float32)


def _cast_forward(x, alias):
    n = x.size
    lanes = _choose_lanes(n, x.shape[-1])
    rows = n // lanes
    x2 = x.reshape(rows, lanes)
    tm, grid = _row_tiling(rows, lanes)
    block = (rows, lanes) if grid == 1 else (tm, lanes)
    io_alias = {0: 0} if (alias and x.dtype == jnp.float32) else {}
    out = pl.pallas_call(
        _cast_kernel,
        out_shape=jax.ShapeDtypeStruct((rows, lanes), jnp.float32),
        grid=(grid,),
        in_specs=[pl.BlockSpec(block, lambda i: (i, 0))],
        out_specs=pl.BlockSpec(block, lambda i: (i, 0)),
        input_output_aliases=io_alias,
        compiler_params=pltpu.CompilerParams(
            dimension_semantics=_grid_semantics(grid),
            vmem_limit_bytes=_VMEM_LIMIT_BYTES),
    )(x2)
    return out.reshape(x.shape)


_cast_forward_jit = jax.jit(_cast_forward, static_argnums=1)
_cast_forward_inplace = jax.jit(_cast_forward, static_argnums=1, donate_argnums=0)


# ---------------------------------------------------------------------------
# Fallback: general (trained / non-identity) weight -> bf16 MXU matmul with a
# lane-dense block-diagonal widened contraction.
# ---------------------------------------------------------------------------

def _widen_group(in_dim, out_dim, m):
    """Widening factor g: reshape x (m, in) -> (m/g, g*in) and use the resident
    block-diagonal weight kron(I_g, W^T) so K and N become multiples of 128."""
    if in_dim >= 128 and out_dim >= 128:
        return 1
    if 128 % in_dim != 0 or 128 % out_dim != 0:
        return 1
    g = max(128 // in_dim, 128 // out_dim)
    if g <= 1 or m % g != 0:
        return 1
    return g


def _make_wide_weight(w, group):
    """w: nn.Linear weight (out, in) f32 -> kron(I_g, w.T) in bf16, (g*in, g*out)."""
    wt = w.T.astype(jnp.bfloat16)
    if group > 1:
        wt = jnp.kron(jnp.eye(group, dtype=jnp.bfloat16), wt)
    return wt


def _linear_kernel(x_ref, wt_ref, o_ref):
    x_bf16 = x_ref[...].astype(jnp.bfloat16)                 # x.to(bfloat16)
    y = jnp.dot(x_bf16, wt_ref[...],
                preferred_element_type=jnp.float32)          # bf16 MXU, f32 acc
    # torch's bf16 linear yields a bf16 result; .float() then upcasts.
    o_ref[...] = y.astype(jnp.bfloat16).astype(jnp.float32)


def _linear_forward(x, wt_wide, group):
    k_wide, n_wide = wt_wide.shape
    in_dim = k_wide // group
    out_dim = n_wide // group
    lead = x.shape[:-1]
    x2 = x.reshape(-1, in_dim)
    mw = x2.shape[0] // group
    xw = x2.reshape(mw, k_wide)
    tm, grid = _row_tiling(mw, max(k_wide, n_wide))
    bm = mw if grid == 1 else tm
    out = pl.pallas_call(
        _linear_kernel,
        out_shape=jax.ShapeDtypeStruct((mw, n_wide), jnp.float32),
        grid=(grid,),
        in_specs=[
            pl.BlockSpec((bm, k_wide), lambda i: (i, 0)),
            pl.BlockSpec((k_wide, n_wide), lambda i: (0, 0)),  # resident weight
        ],
        out_specs=pl.BlockSpec((bm, n_wide), lambda i: (i, 0)),
        compiler_params=pltpu.CompilerParams(
            dimension_semantics=_grid_semantics(grid),
            vmem_limit_bytes=_VMEM_LIMIT_BYTES),
    )(xw, wt_wide)
    return out.reshape(lead + (out_dim,))


_linear_forward_jit = jax.jit(_linear_forward, static_argnums=2)


# ---------------------------------------------------------------------------
# Public API.
# ---------------------------------------------------------------------------

class LayerState:
    """Minimal stand-in for the RWKV per-layer state container."""

    def __init__(self, tmix_wkv_states):
        self.tmix_wkv_states = tmix_wkv_states


class EncoderDecoder:
    """JAX/Pallas port of the PyTorch EncoderDecoder (eval-mode forward).

    The identity-weight dispatch is decided ONCE at construction time (static,
    host-side) so the per-call hot path has no device->host sync; the bf16
    (block-diagonal) weight is prepared once and cached.
    """

    def __init__(self, head_size, emb=None, r=64, weight=None, identity=None):
        del emb  # unused (parity with the PyTorch signature)
        if weight is None:
            # nn.Linear(r, head_size).weight set to eye (identity when r == head_size).
            weight = jnp.eye(head_size, r, dtype=jnp.float32)
        self.weight = weight
        out_dim, in_dim = weight.shape
        if identity is None:
            identity = (out_dim == in_dim) and bool(
                np.array_equal(np.asarray(weight),
                               np.eye(out_dim, dtype=np.asarray(weight).dtype)))
        self.identity = bool(identity)
        self._wt_cache = {}

    def _wide_weight(self, group):
        wt = self._wt_cache.get(group)
        if wt is None:
            wt = _make_wide_weight(self.weight, group)
            self._wt_cache[group] = wt
        return wt

    def __call__(self, layer_state, *, donate=False):
        x = layer_state.tmix_wkv_states
        if self.identity:
            inplace = bool(donate) and x.dtype == jnp.float32
            fn = _cast_forward_inplace if inplace else _cast_forward_jit
            layer_state.tmix_wkv_states = fn(x, inplace)
        else:
            out_dim, in_dim = self.weight.shape
            m = int(np.prod(x.shape[:-1]))
            g = _widen_group(in_dim, out_dim, m)
            wt = self._wide_weight(g)
            layer_state.tmix_wkv_states = _linear_forward_jit(x, wt, g)
        return layer_state


def encoder_decoder_forward(tmix_wkv_states, encode_weight, identity=None):
    """Functional forward.  Pass `identity=` explicitly to avoid the one-time
    host-side weight check (and to keep the fast path under an outer jit)."""
    out_dim, in_dim = encode_weight.shape
    if identity is None:
        try:
            identity = (out_dim == in_dim) and bool(
                np.array_equal(np.asarray(encode_weight),
                               np.eye(out_dim, dtype=np.asarray(encode_weight).dtype)))
        except Exception:          # traced weight under an outer jit
            identity = False
    if identity:
        return _cast_forward_jit(tmix_wkv_states, False)
    m = int(np.prod(tmix_wkv_states.shape[:-1]))
    g = _widen_group(in_dim, out_dim, m)
    wt = _make_wide_weight(encode_weight, g)
    return _linear_forward_jit(tmix_wkv_states, wt, g)


if __name__ == "__main__":
    head_size = 64
    r = 64            # module default: nn.Linear(r, head_size)
    batch = 2
    n_head = 4

    key = jax.random.PRNGKey(0)
    # RWKV v6 wkv state: (B, n_head, head_size, head_size)
    x = jax.random.normal(
        key, (batch, n_head, head_size, head_size), dtype=jnp.float32)

    # --- general (non-identity) weight: MXU path with block-diag widening ---
    w2 = 0.1 * jax.random.normal(
        jax.random.PRNGKey(1), (head_size, r), dtype=jnp.float32)
    ref2 = (x.astype(jnp.bfloat16) @ w2.T.astype(jnp.bfloat16)).astype(jnp.float32)
    enc2 = EncoderDecoder(head_size, r=r, weight=w2)
    state2 = enc2(LayerState(x))
    out2 = jax.block_until_ready(state2.tmix_wkv_states)
    assert out2.shape == (batch, n_head, head_size, head_size)
    assert jnp.allclose(out2, ref2, atol=5e-2, rtol=5e-2)

    # --- identity weight: pure cast kernel, in-place (donated+aliased) update ---
    ref = x.astype(jnp.bfloat16).astype(jnp.float32)   # computed BEFORE donation
    enc = EncoderDecoder(head_size, r=r)               # default eye init
    state = LayerState(x)
    state = enc(state, donate=True)                    # donates x's HBM buffer
    out = jax.block_until_ready(state.tmix_wkv_states)
    assert out.shape == (batch, n_head, head_size, head_size)
    assert jnp.allclose(out, ref, atol=1e-2, rtol=1e-2)

    print("KERNEL_OK")
</pallas_src>

<mosaic_0001>
module attributes {stable_mosaic.version = 11 : i64} {
  func.func @_linear_kernel(%arg0: i32, %arg1: memref<256x128xf32, #tpu.memory_space<vmem>>, %arg2: memref<128x128xbf16, #tpu.memory_space<vmem>>, %arg3: memref<256x128xf32, #tpu.memory_space<vmem>>) attributes {dimension_semantics = [#tpu.dimension_semantics<arbitrary>], iteration_bounds = array<i64: 1>, scalar_prefetch = 0 : i64, scratch_operands = 0 : i64, tpu.core_type = #tpu.core_type<tc>, window_params = [{transform_indices = @transform_0, window_bounds = array<i64: 256, 128>}, {pipeline_mode = #tpu.pipeline_mode<synchronous>, transform_indices = @transform_1, window_bounds = array<i64: 128, 128>}, {transform_indices = @transform_2, window_bounds = array<i64: 256, 128>}]} {
    %c0 = arith.constant 0 : index
    %c0_0 = arith.constant 0 : index
    %0 = vector.load %arg1[%c0, %c0_0] : memref<256x128xf32, #tpu.memory_space<vmem>>, vector<256x128xf32>
    %1 = arith.truncf %0 : vector<256x128xf32> to vector<256x128xbf16>
    %c0_1 = arith.constant 0 : index
    %c0_2 = arith.constant 0 : index
    %2 = vector.load %arg2[%c0_1, %c0_2] : memref<128x128xbf16, #tpu.memory_space<vmem>>, vector<128x128xbf16>
    %cst = arith.constant dense<0.000000e+00> : vector<256x128xf32>
    %3 = tpu.matmul %1, %2, %cst {dimension_numbers = #tpu.dot_dimension_numbers<[1], [0], [0], [1], [0, 0, 1, 1], [], []>} : vector<256x128xbf16>, vector<128x128xbf16>, vector<256x128xf32> -> vector<256x128xf32>
    %4 = arith.truncf %3 : vector<256x128xf32> to vector<256x128xbf16>
    %5 = arith.extf %4 : vector<256x128xbf16> to vector<256x128xf32>
    %c0_3 = arith.constant 0 : index
    %c0_4 = arith.constant 0 : index
    %6 = vector.load %arg3[%c0_3, %c0_4] : memref<256x128xf32, #tpu.memory_space<vmem>>, vector<256x128xf32>
    tpu.vector_store %arg3[%c0_3, %c0_4], %5 {strides = array<i32>} : memref<256x128xf32, #tpu.memory_space<vmem>>, vector<256x128xf32>,
    return
  }
  func.func @transform_0(%arg0: i32) -> (i32, i32) {
    %c0_i32 = arith.constant 0 : i32
    %c0_i32_0 = arith.constant 0 : i32
    return %arg0, %c0_i32 : i32, i32
  }
  func.func @transform_1(%arg0: i32) -> (i32, i32) {
    %c0_i32 = arith.constant 0 : i32
    %c0_i32_0 = arith.constant 0 : i32
    %c0_i32_1 = arith.constant 0 : i32
    return %c0_i32, %c0_i32_0 : i32, i32
  }
  func.func @transform_2(%arg0: i32) -> (i32, i32) {
    %c0_i32 = arith.constant 0 : i32
    %c0_i32_0 = arith.constant 0 : i32
    return %arg0, %c0_i32 : i32, i32
  }
}

</mosaic_0001>

<llo_original>
// kernel: _linear_forward.1
$region0: #{_linear_forward.1}
  #allocation0 [shape = 'u32[]', space=smem, size = 0x4, offset = 0x4, fixed_abs, tag = 'smem constant byte address 0x4 - core index']
  #allocation1 [shape = 'u32[72,128]{1,0:T(1,128)}', space=vmem, size = 0x9000, scoped, tag = 'internal scratch']
  %s0 = inlined_call_operand.vmem [shape: f32[256,128], index: 0, kind: input, shape index: {}]
  %s1 = inlined_call_operand.vmem [shape: bf16[128,128], index: 1, kind: input, shape index: {}]
  %s2 = inlined_call_operand.vmem [shape: f32[256,128], index: 2, kind: output, shape index: {}]
  %s3 = sld [smem:[#allocation0]]
  $region18: #{_linear_forward.1} parent=0
    _
  %s5 = ssub.s32 1, %s3
  %s6 = scalar_select 0, %s5, %s3
  // Predicated region
  $region2: #{_linear_forward.1} parent=0 // pred_check
    _
  $region3: #{_linear_forward.1} parent=0 // pred_check_branch
    %8 = sbr.rel (0) target = $region5
  $region4: #{_linear_forward.1} parent=0 // pred_region
    _
  $region5: #{_linear_forward.1} parent=0 // pred_fallthru
    _
  // Predicated region
  $region6: #{_linear_forward.1} parent=0 // pred_check
    _
  $region7: #{_linear_forward.1} parent=0 // pred_check_branch
    %10 = sbr.rel (0) target = $region9
  $region8: #{_linear_forward.1} parent=0 // pred_region
    _
  $region9: #{_linear_forward.1} parent=0 // pred_fallthru
    _
  %v11 = vld [vmem:[%s0] sm:$0xff]
  %v12 = vld [vmem:[%s0 + $0x8] sm:$0xff]
  %v13 = vld [vmem:[%s0 + $0x10] sm:$0xff]
  %v14 = vld [vmem:[%s0 + $0x18] sm:$0xff]
  %v15 = vld [vmem:[%s0 + $0x20] sm:$0xff]
  %v16 = vld [vmem:[%s0 + $0x28] sm:$0xff]
  %v17 = vld [vmem:[%s0 + $0x30] sm:$0xff]
  %v18 = vld [vmem:[%s0 + $0x38] sm:$0xff]
  %v19 = vld [vmem:[%s0 + $0x40] sm:$0xff]
  %v20 = vld [vmem:[%s0 + $0x48] sm:$0xff]
  %v21 = vld [vmem:[%s0 + $0x50] sm:$0xff]
  %v22 = vld [vmem:[%s0 + $0x58] sm:$0xff]
  %v23 = vld [vmem:[%s0 + $0x60] sm:$0xff]
  %v24 = vld [vmem:[%s0 + $0x68] sm:$0xff]
  %v25 = vld [vmem:[%s0 + $0x70] sm:$0xff]
  %v26 = vld [vmem:[%s0 + $0x78] sm:$0xff]
  %v27 = vld [vmem:[%s0 + $0x80] sm:$0xff]
  %v28 = vld [vmem:[%s0 + $0x88] sm:$0xff]
  %v29 = vld [vmem:[%s0 + $0x90] sm:$0xff]
  %v30 = vld [vmem:[%s0 + $0x98] sm:$0xff]
  %v31 = vld [vmem:[%s0 + $0xa0] sm:$0xff]
  %v32 = vld [vmem:[%s0 + $0xa8] sm:$0xff]
  %v33 = vld [vmem:[%s0 + $0xb0] sm:$0xff]
  %v34 = vld [vmem:[%s0 + $0xb8] sm:$0xff]
  %v35 = vld [vmem:[%s0 + $0xc0] sm:$0xff]
  %v36 = vld [vmem:[%s0 + $0xc8] sm:$0xff]
  %v37 = vld [vmem:[%s0 + $0xd0] sm:$0xff]
  %v38 = vld [vmem:[%s0 + $0xd8] sm:$0xff]
  %v39 = vld [vmem:[%s0 + $0xe0] sm:$0xff]
  %v40 = vld [vmem:[%s0 + $0xe8] sm:$0xff]
  %v41 = vld [vmem:[%s0 + $0xf0] sm:$0xff]
  %v42 = vld [vmem:[%s0 + $0xf8] sm:$0xff]
  %v43 = vpack.c.bf16 %v12, %v11
  %v44 = vpack.c.bf16 %v14, %v13
  %v45 = vpack.c.bf16 %v16, %v15
  %v46 = vpack.c.bf16 %v18, %v17
  %v47 = vpack.c.bf16 %v20, %v19
  %v48 = vpack.c.bf16 %v22, %v21
  %v49 = vpack.c.bf16 %v24, %v23
  %v50 = vpack.c.bf16 %v26, %v25
  %v51 = vpack.c.bf16 %v28, %v27
  %v52 = vpack.c.bf16 %v30, %v29
  %v53 = vpack.c.bf16 %v32, %v31
  %v54 = vpack.c.bf16 %v34, %v33
  %v55 = vpack.c.bf16 %v36, %v35
  %v56 = vpack.c.bf16 %v38, %v37
  %v57 = vpack.c.bf16 %v40, %v39
  %v58 = vpack.c.bf16 %v42, %v41
  %v59 = vld [vmem:[%s1] sm:$0xf]
  %v60 = vld [vmem:[%s1 + $0x4] sm:$0xf]
  %v61 = vld [vmem:[%s1 + $0x8] sm:$0xf]
  %v62 = vld [vmem:[%s1 + $0xc] sm:$0xf]
  %v63 = vld [vmem:[%s1 + $0x10] sm:$0xf]
  %v64 = vld [vmem:[%s1 + $0x14] sm:$0xf]
  %v65 = vld [vmem:[%s1 + $0x18] sm:$0xf]
  %v66 = vld [vmem:[%s1 + $0x1c] sm:$0xf]
  %v67 = vld [vmem:[%s1 + $0x20] sm:$0xf]
  %v68 = vld [vmem:[%s1 + $0x24] sm:$0xf]
  %v69 = vld [vmem:[%s1 + $0x28] sm:$0xf]
  %v70 = vld [vmem:[%s1 + $0x2c] sm:$0xf]
  %v71 = vld [vmem:[%s1 + $0x30] sm:$0xf]
  %v72 = vld [vmem:[%s1 + $0x34] sm:$0xf]
  %v73 = vld [vmem:[%s1 + $0x38] sm:$0xf]
  %v74 = vld [vmem:[%s1 + $0x3c] sm:$0xf]
  %v91 = vunpack.c.l.b16 %v59
  %v92 = vunpack.c.l.b16 %v60
  %v93 = vunpack.c.l.b16 %v61
  %v94 = vunpack.c.l.b16 %v62
  %v95 = vunpack.c.l.b16 %v63
  %v96 = vunpack.c.l.b16 %v64
  %v97 = vunpack.c.l.b16 %v65
  %v98 = vunpack.c.l.b16 %v66
  %v99 = vunpack.c.l.b16 %v67
  %v100 = vunpack.c.l.b16 %v68
  %v101 = vunpack.c.l.b16 %v69
  %v102 = vunpack.c.l.b16 %v70
  %v103 = vunpack.c.l.b16 %v71
  %v104 = vunpack.c.l.b16 %v72
  %v105 = vunpack.c.l.b16 %v73
  %v106 = vunpack.c.l.b16 %v74
  %v107 = vpack.c.b16 %v92, %v91
  %v108 = vpack.c.b16 %v94, %v93
  %v109 = vpack.c.b16 %v96, %v95
  %v110 = vpack.c.b16 %v98, %v97
  %v111 = vpack.c.b16 %v100, %v99
  %v112 = vpack.c.b16 %v102, %v101
  %v113 = vpack.c.b16 %v104, %v103
  %v114 = vpack.c.b16 %v106, %v105
  %123 = vmatpush.bf16.msra.mxu0 %v114
  %124 = vmatpush.bf16.msra.mxu0 %v113
  %125 = vmatpush.bf16.msra.mxu0 %v112
  %126 = vmatpush.bf16.msra.mxu0 %v111
  %127 = vmatpush.bf16.msra.mxu0 %v110
  %128 = vmatpush.bf16.msra.mxu0 %v109
  %129 = vmatpush.bf16.msra.mxu0 %v108
  %130 = vmatpush.bf16.msra.mxu0 %v107
  %131 = vmatmul.bf16.gmra.mxu0 %v43
  %v132 = vpop.f32.mrf.mxu0
  %v133 = vadd.f32 0.0, %v132
  %v134 = vpop.f32.mrf.mxu0
  %v135 = vadd.f32 0.0, %v134
  %136 = vmatmul.bf16.gmra.mxu0 %v44
  %v137 = vpop.f32.mrf.mxu0
  %v138 = vadd.f32 0.0, %v137
  %v139 = vpop.f32.mrf.mxu0
  %v140 = vadd.f32 0.0, %v139
  %141 = vmatmul.bf16.gmra.mxu0 %v45
  %v142 = vpop.f32.mrf.mxu0
  %v143 = vadd.f32 0.0, %v142
  %v144 = vpop.f32.mrf.mxu0
  %v145 = vadd.f32 0.0, %v144
  %146 = vmatmul.bf16.gmra.mxu0 %v46
  %v147 = vpop.f32.mrf.mxu0
  %v148 = vadd.f32 0.0, %v147
  %v149 = vpop.f32.mrf.mxu0
  %v150 = vadd.f32 0.0, %v149
  %151 = vmatmul.bf16.gmra.mxu0 %v47
  %v152 = vpop.f32.mrf.mxu0
  %v153 = vadd.f32 0.0, %v152
  %v154 = vpop.f32.mrf.mxu0
  %v155 = vadd.f32 0.0, %v154
  %156 = vmatmul.bf16.gmra.mxu0 %v48
  %v157 = vpop.f32.mrf.mxu0
  %v158 = vadd.f32 0.0, %v157
  %v159 = vpop.f32.mrf.mxu0
  %v160 = vadd.f32 0.0, %v159
  %161 = vmatmul.bf16.gmra.mxu0 %v49
  %v162 = vpop.f32.mrf.mxu0
  %v163 = vadd.f32 0.0, %v162
  %v164 = vpop.f32.mrf.mxu0
  %v165 = vadd.f32 0.0, %v164
  %166 = vmatmul.bf16.gmra.mxu0 %v50
  %v167 = vpop.f32.mrf.mxu0
  %v168 = vadd.f32 0.0, %v167
  %v169 = vpop.f32.mrf.mxu0
  %v170 = vadd.f32 0.0, %v169
  %171 = vmatmul.bf16.gmra.mxu0 %v51
  %v172 = vpop.f32.mrf.mxu0
  %v173 = vadd.f32 0.0, %v172
  %v174 = vpop.f32.mrf.mxu0
  %v175 = vadd.f32 0.0, %v174
  %176 = vmatmul.bf16.gmra.mxu0 %v52
  %v177 = vpop.f32.mrf.mxu0
  %v178 = vadd.f32 0.0, %v177
  %v179 = vpop.f32.mrf.mxu0
  %v180 = vadd.f32 0.0, %v179
  %181 = vmatmul.bf16.gmra.mxu0 %v53
  %v182 = vpop.f32.mrf.mxu0
  %v183 = vadd.f32 0.0, %v182
  %v184 = vpop.f32.mrf.mxu0
  %v185 = vadd.f32 0.0, %v184
  %186 = vmatmul.bf16.gmra.mxu0 %v54
  %v187 = vpop.f32.mrf.mxu0
  %v188 = vadd.f32 0.0, %v187
  %v189 = vpop.f32.mrf.mxu0
  %v190 = vadd.f32 0.0, %v189
  %191 = vmatmul.bf16.gmra.mxu0 %v55
  %v192 = vpop.f32.mrf.mxu0
  %v193 = vadd.f32 0.0, %v192
  %v194 = vpop.f32.mrf.mxu0
  %v195 = vadd.f32 0.0, %v194
  %196 = vmatmul.bf16.gmra.mxu0 %v56
  %v197 = vpop.f32.mrf.mxu0
  %v198 = vadd.f32 0.0, %v197
  %v199 = vpop.f32.mrf.mxu0
  %v200 = vadd.f32 0.0, %v199
  %201 = vmatmul.bf16.gmra.mxu0 %v57
  %v202 = vpop.f32.mrf.mxu0
  %v203 = vadd.f32 0.0, %v202
  %v204 = vpop.f32.mrf.mxu0
  %v205 = vadd.f32 0.0, %v204
  %206 = vmatmul.bf16.gmra.mxu0 %v58
  %v207 = vpop.f32.mrf.mxu0
  %v208 = vadd.f32 0.0, %v207
  %v209 = vpop.f32.mrf.mxu0
  %v210 = vadd.f32 0.0, %v209
  %211 = vdwg.mxu0
  %v212 = vpack.c.bf16 %v133, %v133
  %v213 = vpack.c.bf16 %v135, %v135
  %v214 = vpack.c.bf16 %v138, %v138
  %v215 = vpack.c.bf16 %v140, %v140
  %v216 = vpack.c.bf16 %v143, %v143
  %v217 = vpack.c.bf16 %v145, %v145
  %v218 = vpack.c.bf16 %v148, %v148
  %v219 = vpack.c.bf16 %v150, %v150
  %v220 = vpack.c.bf16 %v153, %v153
  %v221 = vpack.c.bf16 %v155, %v155
  %v222 = vpack.c.bf16 %v158, %v158
  %v223 = vpack.c.bf16 %v160, %v160
  %v224 = vpack.c.bf16 %v163, %v163
  %v225 = vpack.c.bf16 %v165, %v165
  %v226 = vpack.c.bf16 %v168, %v168
  %v227 = vpack.c.bf16 %v170, %v170
  %v228 = vpack.c.bf16 %v173, %v173
  %v229 = vpack.c.bf16 %v175, %v175
  %v230 = vpack.c.bf16 %v178, %v178
  %v231 = vpack.c.bf16 %v180, %v180
  %v232 = vpack.c.bf16 %v183, %v183
  %v233 = vpack.c.bf16 %v185, %v185
  %v234 = vpack.c.bf16 %v188, %v188
  %v235 = vpack.c.bf16 %v190, %v190
  %v236 = vpack.c.bf16 %v193, %v193
  %v237 = vpack.c.bf16 %v195, %v195
  %v238 = vpack.c.bf16 %v198, %v198
  %v239 = vpack.c.bf16 %v200, %v200
  %v240 = vpack.c.bf16 %v203, %v203
  %v241 = vpack.c.bf16 %v205, %v205
  %v242 = vpack.c.bf16 %v208, %v208
  %v243 = vpack.c.bf16 %v210, %v210
  %v244 = vunpack.c.l.bf16 %v212
  %v245 = vunpack.c.l.bf16 %v213
  %v246 = vunpack.c.l.bf16 %v214
  %v247 = vunpack.c.l.bf16 %v215
  %v248 = vunpack.c.l.bf16 %v216
  %v249 = vunpack.c.l.bf16 %v217
  %v250 = vunpack.c.l.bf16 %v218
  %v251 = vunpack.c.l.bf16 %v219
  %v252 = vunpack.c.l.bf16 %v220
  %v253 = vunpack.c.l.bf16 %v221
  %v254 = vunpack.c.l.bf16 %v222
  %v255 = vunpack.c.l.bf16 %v223
  %v256 = vunpack.c.l.bf16 %v224
  %v257 = vunpack.c.l.bf16 %v225
  %v258 = vunpack.c.l.bf16 %v226
  %v259 = vunpack.c.l.bf16 %v227
  %v260 = vunpack.c.l.bf16 %v228
  %v261 = vunpack.c.l.bf16 %v229
  %v262 = vunpack.c.l.bf16 %v230
  %v263 = vunpack.c.l.bf16 %v231
  %v264 = vunpack.c.l.bf16 %v232
  %v265 = vunpack.c.l.bf16 %v233
  %v266 = vunpack.c.l.bf16 %v234
  %v267 = vunpack.c.l.bf16 %v235
  %v268 = vunpack.c.l.bf16 %v236
  %v269 = vunpack.c.l.bf16 %v237
  %v270 = vunpack.c.l.bf16 %v238
  %v271 = vunpack.c.l.bf16 %v239
  %v272 = vunpack.c.l.bf16 %v240
  %v273 = vunpack.c.l.bf16 %v241
  %v274 = vunpack.c.l.bf16 %v242
  %v275 = vunpack.c.l.bf16 %v243
  %276 = vst [vmem:[%s2] sm:$0xff] %v244
  %277 = vst [vmem:[%s2 + $0x8] sm:$0xff] %v245
  %278 = vst [vmem:[%s2 + $0x10] sm:$0xff] %v246
  %279 = vst [vmem:[%s2 + $0x18] sm:$0xff] %v247
  %280 = vst [vmem:[%s2 + $0x20] sm:$0xff] %v248
  %281 = vst [vmem:[%s2 + $0x28] sm:$0xff] %v249
  %282 = vst [vmem:[%s2 + $0x30] sm:$0xff] %v250
  %283 = vst [vmem:[%s2 + $0x38] sm:$0xff] %v251
  %284 = vst [vmem:[%s2 + $0x40] sm:$0xff] %v252
  %285 = vst [vmem:[%s2 + $0x48] sm:$0xff] %v253
  %286 = vst [vmem:[%s2 + $0x50] sm:$0xff] %v254
  %287 = vst [vmem:[%s2 + $0x58] sm:$0xff] %v255
  %288 = vst [vmem:[%s2 + $0x60] sm:$0xff] %v256
  %289 = vst [vmem:[%s2 + $0x68] sm:$0xff] %v257
  %290 = vst [vmem:[%s2 + $0x70] sm:$0xff] %v258
  %291 = vst [vmem:[%s2 + $0x78] sm:$0xff] %v259
  %292 = vst [vmem:[%s2 + $0x80] sm:$0xff] %v260
  %293 = vst [vmem:[%s2 + $0x88] sm:$0xff] %v261
  %294 = vst [vmem:[%s2 + $0x90] sm:$0xff] %v262
  %295 = vst [vmem:[%s2 + $0x98] sm:$0xff] %v263
  %296 = vst [vmem:[%s2 + $0xa0] sm:$0xff] %v264
  %297 = vst [vmem:[%s2 + $0xa8] sm:$0xff] %v265
  %298 = vst [vmem:[%s2 + $0xb0] sm:$0xff] %v266
  %299 = vst [vmem:[%s2 + $0xb8] sm:$0xff] %v267
  %300 = vst [vmem:[%s2 + $0xc0] sm:$0xff] %v268
  %301 = vst [vmem:[%s2 + $0xc8] sm:$0xff] %v269
  %302 = vst [vmem:[%s2 + $0xd0] sm:$0xff] %v270
  %303 = vst [vmem:[%s2 + $0xd8] sm:$0xff] %v271
  %304 = vst [vmem:[%s2 + $0xe0] sm:$0xff] %v272
  %305 = vst [vmem:[%s2 + $0xe8] sm:$0xff] %v273
  %306 = vst [vmem:[%s2 + $0xf0] sm:$0xff] %v274
  %307 = vst [vmem:[%s2 + $0xf8] sm:$0xff] %v275
  // Predicated region
  $region10: #{_linear_forward.1} parent=0 // pred_check
    _
  $region11: #{_linear_forward.1} parent=0 // pred_check_branch
    %309 = sbr.rel (0) target = $region13
  $region12: #{_linear_forward.1} parent=0 // pred_region
    _
  $region13: #{_linear_forward.1} parent=0 // pred_fallthru
    _
  // Predicated region
  $region14: #{_linear_forward.1} parent=0 // pred_check
    _
  $region15: #{_linear_forward.1} parent=0 // pred_check_branch
    %311 = sbr.rel (0) target = $region17
  $region16: #{_linear_forward.1} parent=0 // pred_region
    _
  $region17: #{_linear_forward.1} parent=0 // pred_fallthru
    _

</llo_original>
